<compile_context>
chip_gen: v7x
topology: tpu7x:2x2x1
jax: 0.10.0
libtpu: 0.0.40
codegen_flags: <defaults>
</compile_context>

<pallas_src>
import jax
import jax.numpy as jnp
from jax.experimental import pallas as pl
from jax.experimental.pallas import tpu as pltpu


def _make_kernel(C, L, offsets, use_bf16):
    """Kernel body for one lane-dense (C, L) activation slab (L = nb * H * W)."""
    cdtype = jnp.bfloat16 if use_bf16 else jnp.float32

    def kernel(x_ref, w1_ref, b1_ref, w2_ref, b2_ref, m_ref, o_ref):
        x = x_ref[...]                                        # (C, L) f32

        def stacked_taps(inp):
            # Build the (9C, L) stacked activation: rows [t*C:(t+1)*C) hold `inp`
            # shifted by offsets[t], with out-of-image / cross-image lanes zeroed
            # by the per-tap validity mask. Center tap needs no shift or mask.
            parts = []
            for t in range(9):
                off = offsets[t]
                if off == 0:
                    parts.append(inp)
                else:
                    z = pltpu.roll(inp, shift=(-off) % L, axis=1)
                    parts.append(z * m_ref[t])                # (C, L) * (1, L)
            return jnp.concatenate(parts, axis=0).astype(cdtype)   # (9C, L)

        # conv1: single K=9C matmul + bias + ReLU
        y1 = jnp.dot(w1_ref[...], stacked_taps(x),
                     preferred_element_type=jnp.float32) + b1_ref[...]
        y1 = jnp.maximum(y1, 0.0)
        # conv2: single K=9C matmul + bias
        y2 = jnp.dot(w2_ref[...], stacked_taps(y1),
                     preferred_element_type=jnp.float32) + b2_ref[...]
        # identity shortcut (reuses the already-loaded tile)
        o_ref[...] = x + y2

    return kernel


def _pick_nb(N, P, target_lanes=2048):
    """Largest batch fold that keeps >= 2 parallel grid steps (v7x megacore) and a
    moderate lane width per step."""
    nb = 1
    for cand in range(2, N + 1):
        if N % cand:
            continue
        if N // cand < min(N, 2):        # keep >= 2 grid steps when possible
            continue
        if cand * P > target_lanes:
            continue
        nb = cand
    return nb


def shortcut_block(x_nchw, w1, b1, w2, b2, *, nb=None, use_bf16=False):
    """x_nchw: (N, C, H, W) f32; w*: (C, C, 3, 3) OIHW; b*: (C,)."""
    N, C, H, W = x_nchw.shape
    P = H * W
    if nb is None:
        nb = _pick_nb(N, P)
    assert N % nb == 0
    G = N // nb
    L = nb * P
    cdtype = jnp.bfloat16 if use_bf16 else jnp.float32

    # Layout plumbing (wrapper side): group nb images along the lane axis so every
    # grid step sees one lane-dense (C, nb*P) slab.
    x_g = (x_nchw.astype(jnp.float32)
           .reshape(G, nb, C, P).transpose(0, 2, 1, 3).reshape(G, C, L))

    # OIHW -> (C_out, 9*C_in); column index = (ky*3 + kx)*C + c_in, matching the
    # tap-major stacking done in the kernel.
    w1m = jnp.transpose(w1, (0, 2, 3, 1)).reshape(C, 9 * C).astype(cdtype)
    w2m = jnp.transpose(w2, (0, 2, 3, 1)).reshape(C, 9 * C).astype(cdtype)
    b1c = b1.reshape(C, 1).astype(jnp.float32)
    b2c = b2.reshape(C, 1).astype(jnp.float32)

    # Flattened-index offset of each 3x3 tap + its lane-validity mask (implicit zero
    # padding). Masks are tiled nb times so cross-image roll wraparound stays masked.
    offsets = [(ky - 1) * W + (kx - 1) for ky in range(3) for kx in range(3)]
    row = jnp.arange(P, dtype=jnp.int32) // W
    col = jnp.arange(P, dtype=jnp.int32) % W
    mask_list = []
    for ky in range(3):
        for kx in range(3):
            oy, ox = ky - 1, kx - 1
            valid = ((row + oy >= 0) & (row + oy < H) &
                     (col + ox >= 0) & (col + ox < W))
            mask_list.append(valid.astype(jnp.float32))
    masks = jnp.tile(jnp.stack(mask_list, 0).reshape(9, 1, P), (1, 1, nb))  # (9,1,L)

    out_g = pl.pallas_call(
        _make_kernel(C, L, offsets, use_bf16),
        out_shape=jax.ShapeDtypeStruct((G, C, L), jnp.float32),
        grid_spec=pltpu.PrefetchScalarGridSpec(
            num_scalar_prefetch=0,
            grid=(G,),
            in_specs=[
                pl.BlockSpec((pl.Squeezed(), C, L), lambda g: (g, 0, 0)),  # acts
                pl.BlockSpec((C, 9 * C), lambda g: (0, 0)),                # conv1 W
                pl.BlockSpec((C, 1), lambda g: (0, 0)),                    # conv1 b
                pl.BlockSpec((C, 9 * C), lambda g: (0, 0)),                # conv2 W
                pl.BlockSpec((C, 1), lambda g: (0, 0)),                    # conv2 b
                pl.BlockSpec((9, 1, L), lambda g: (0, 0, 0)),              # masks
            ],
            out_specs=pl.BlockSpec((pl.Squeezed(), C, L), lambda g: (g, 0, 0)),
        ),
        compiler_params=pltpu.CompilerParams(
            dimension_semantics=("parallel",),
            vmem_limit_bytes=48 * 1024 * 1024,
        ),
    )(x_g, w1m, b1c, w2m, b2c, masks)

    return (out_g.reshape(G, C, nb, P).transpose(0, 2, 1, 3)
            .reshape(N, C, H, W))


def _reference(x, w1, b1, w2, b2):
    dn = ("NCHW", "OIHW", "NCHW")
    y = jax.lax.conv_general_dilated(x, w1, (1, 1), ((1, 1), (1, 1)),
                                     dimension_numbers=dn)
    y = y + b1[None, :, None, None]
    y = jnp.maximum(y, 0.0)
    y = jax.lax.conv_general_dilated(y, w2, (1, 1), ((1, 1), (1, 1)),
                                     dimension_numbers=dn)
    y = y + b2[None, :, None, None]
    return x + y


if __name__ == "__main__":
    C, H, W = 4, 16, 16
    key = jax.random.PRNGKey(0)
    kx2, kx4, k1, k2, k3, k4 = jax.random.split(key, 6)

    # deterministic synthetic parameters (shapes from Conv2d(C, C, 3, padding=1))
    w1 = 0.1 * jax.random.normal(k1, (C, C, 3, 3), dtype=jnp.float32)
    b1 = 0.1 * jax.random.normal(k2, (C,), dtype=jnp.float32)
    w2 = 0.1 * jax.random.normal(k3, (C, C, 3, 3), dtype=jnp.float32)
    b2 = 0.1 * jax.random.normal(k4, (C,), dtype=jnp.float32)

    # Primary check: N=2 (two parallel grid steps, nb=1), strict f32 parity.
    x2 = jax.random.normal(kx2, (2, C, H, W), dtype=jnp.float32)
    out = jax.block_until_ready(shortcut_block(x2, w1, b1, w2, b2))
    ref = jax.block_until_ready(_reference(x2, w1, b1, w2, b2))
    assert out.shape == ref.shape and out.dtype == ref.dtype
    assert jnp.max(jnp.abs(out - ref)) < 1e-4

    # Batch-folding check: N=4 with 2 images folded into the lane axis per step.
    x4 = jax.random.normal(kx4, (4, C, H, W), dtype=jnp.float32)
    out4 = jax.block_until_ready(shortcut_block(x4, w1, b1, w2, b2, nb=2))
    ref4 = jax.block_until_ready(_reference(x4, w1, b1, w2, b2))
    assert jnp.max(jnp.abs(out4 - ref4)) < 1e-4

    # bf16-MXU path (looser tolerance, gated behind the flag).
    outb = jax.block_until_ready(shortcut_block(x2, w1, b1, w2, b2, use_bf16=True))
    assert jnp.max(jnp.abs(outb - ref)) < 2e-1

    print("KERNEL_OK")
</pallas_src>

<mosaic_0001>
module attributes {stable_mosaic.version = 11 : i64} {
  func.func @kernel(%arg0: i32, %arg1: memref<1x4x256xf32, #tpu.memory_space<vmem>>, %arg2: memref<4x36xf32, #tpu.memory_space<vmem>>, %arg3: memref<4x1xf32, #tpu.memory_space<vmem>>, %arg4: memref<4x36xf32, #tpu.memory_space<vmem>>, %arg5: memref<4x1xf32, #tpu.memory_space<vmem>>, %arg6: memref<9x1x256xf32, #tpu.memory_space<vmem>>, %arg7: memref<1x4x256xf32, #tpu.memory_space<vmem>>) attributes {dimension_semantics = [#tpu.dimension_semantics<parallel>], iteration_bounds = array<i64: 2>, scalar_prefetch = 0 : i64, scratch_operands = 0 : i64, tpu.core_type = #tpu.core_type<tc>, window_params = [{transform_indices = @transform_0, window_bounds = array<i64: 1, 4, 256>}, {pipeline_mode = #tpu.pipeline_mode<synchronous>, transform_indices = @transform_1, window_bounds = array<i64: 4, 36>}, {pipeline_mode = #tpu.pipeline_mode<synchronous>, transform_indices = @transform_2, window_bounds = array<i64: 4, 1>}, {pipeline_mode = #tpu.pipeline_mode<synchronous>, transform_indices = @transform_3, window_bounds = array<i64: 4, 36>}, {pipeline_mode = #tpu.pipeline_mode<synchronous>, transform_indices = @transform_4, window_bounds = array<i64: 4, 1>}, {pipeline_mode = #tpu.pipeline_mode<synchronous>, transform_indices = @transform_5, window_bounds = array<i64: 9, 1, 256>}, {transform_indices = @transform_6, window_bounds = array<i64: 1, 4, 256>}]} {
    %c0 = arith.constant 0 : index
    %c0_0 = arith.constant 0 : index
    %c0_1 = arith.constant 0 : index
    %0 = vector.load %arg1[%c0, %c0_0, %c0_1] : memref<1x4x256xf32, #tpu.memory_space<vmem>>, vector<1x4x256xf32>
    %1 = vector.shape_cast %0 : vector<1x4x256xf32> to vector<4x256xf32>
    %c0_2 = arith.constant 0 : index
    %c0_3 = arith.constant 0 : index
    %2 = vector.load %arg2[%c0_2, %c0_3] : memref<4x36xf32, #tpu.memory_space<vmem>>, vector<4x36xf32>
    %c17_i32 = arith.constant 17 : i32
    %3 = tpu.dynamic_rotate %1 by %c17_i32 dim 1 : vector<4x256xf32>, i32 -> vector<4x256xf32>
    %c0_4 = arith.constant 0 : index
    %c0_5 = arith.constant 0 : index
    %c0_6 = arith.constant 0 : index
    %4 = vector.load %arg6[%c0_4, %c0_5, %c0_6] : memref<9x1x256xf32, #tpu.memory_space<vmem>>, vector<1x1x256xf32>
    %5 = vector.shape_cast %4 : vector<1x1x256xf32> to vector<1x256xf32>
    %6 = vector.broadcast %5 : vector<1x256xf32> to vector<4x256xf32>
    %7 = arith.mulf %3, %6 : vector<4x256xf32>
    %c16_i32 = arith.constant 16 : i32
    %8 = tpu.dynamic_rotate %1 by %c16_i32 dim 1 : vector<4x256xf32>, i32 -> vector<4x256xf32>
    %c1 = arith.constant 1 : index
    %c0_7 = arith.constant 0 : index
    %c0_8 = arith.constant 0 : index
    %9 = vector.load %arg6[%c1, %c0_7, %c0_8] : memref<9x1x256xf32, #tpu.memory_space<vmem>>, vector<1x1x256xf32>
    %10 = vector.shape_cast %9 : vector<1x1x256xf32> to vector<1x256xf32>
    %11 = vector.broadcast %10 : vector<1x256xf32> to vector<4x256xf32>
    %12 = arith.mulf %8, %11 : vector<4x256xf32>
    %c15_i32 = arith.constant 15 : i32
    %13 = tpu.dynamic_rotate %1 by %c15_i32 dim 1 : vector<4x256xf32>, i32 -> vector<4x256xf32>
    %c2 = arith.constant 2 : index
    %c0_9 = arith.constant 0 : index
    %c0_10 = arith.constant 0 : index
    %14 = vector.load %arg6[%c2, %c0_9, %c0_10] : memref<9x1x256xf32, #tpu.memory_space<vmem>>, vector<1x1x256xf32>
    %15 = vector.shape_cast %14 : vector<1x1x256xf32> to vector<1x256xf32>
    %16 = vector.broadcast %15 : vector<1x256xf32> to vector<4x256xf32>
    %17 = arith.mulf %13, %16 : vector<4x256xf32>
    %c1_i32 = arith.constant 1 : i32
    %18 = tpu.dynamic_rotate %1 by %c1_i32 dim 1 : vector<4x256xf32>, i32 -> vector<4x256xf32>
    %c3 = arith.constant 3 : index
    %c0_11 = arith.constant 0 : index
    %c0_12 = arith.constant 0 : index
    %19 = vector.load %arg6[%c3, %c0_11, %c0_12] : memref<9x1x256xf32, #tpu.memory_space<vmem>>, vector<1x1x256xf32>
    %20 = vector.shape_cast %19 : vector<1x1x256xf32> to vector<1x256xf32>
    %21 = vector.broadcast %20 : vector<1x256xf32> to vector<4x256xf32>
    %22 = arith.mulf %18, %21 : vector<4x256xf32>
    %c255_i32 = arith.constant 255 : i32
    %23 = tpu.dynamic_rotate %1 by %c255_i32 dim 1 : vector<4x256xf32>, i32 -> vector<4x256xf32>
    %c5 = arith.constant 5 : index
    %c0_13 = arith.constant 0 : index
    %c0_14 = arith.constant 0 : index
    %24 = vector.load %arg6[%c5, %c0_13, %c0_14] : memref<9x1x256xf32, #tpu.memory_space<vmem>>, vector<1x1x256xf32>
    %25 = vector.shape_cast %24 : vector<1x1x256xf32> to vector<1x256xf32>
    %26 = vector.broadcast %25 : vector<1x256xf32> to vector<4x256xf32>
    %27 = arith.mulf %23, %26 : vector<4x256xf32>
    %c241_i32 = arith.constant 241 : i32
    %28 = tpu.dynamic_rotate %1 by %c241_i32 dim 1 : vector<4x256xf32>, i32 -> vector<4x256xf32>
    %c6 = arith.constant 6 : index
    %c0_15 = arith.constant 0 : index
    %c0_16 = arith.constant 0 : index
    %29 = vector.load %arg6[%c6, %c0_15, %c0_16] : memref<9x1x256xf32, #tpu.memory_space<vmem>>, vector<1x1x256xf32>
    %30 = vector.shape_cast %29 : vector<1x1x256xf32> to vector<1x256xf32>
    %31 = vector.broadcast %30 : vector<1x256xf32> to vector<4x256xf32>
    %32 = arith.mulf %28, %31 : vector<4x256xf32>
    %c240_i32 = arith.constant 240 : i32
    %33 = tpu.dynamic_rotate %1 by %c240_i32 dim 1 : vector<4x256xf32>, i32 -> vector<4x256xf32>
    %c7 = arith.constant 7 : index
    %c0_17 = arith.constant 0 : index
    %c0_18 = arith.constant 0 : index
    %34 = vector.load %arg6[%c7, %c0_17, %c0_18] : memref<9x1x256xf32, #tpu.memory_space<vmem>>, vector<1x1x256xf32>
    %35 = vector.shape_cast %34 : vector<1x1x256xf32> to vector<1x256xf32>
    %36 = vector.broadcast %35 : vector<1x256xf32> to vector<4x256xf32>
    %37 = arith.mulf %33, %36 : vector<4x256xf32>
    %c239_i32 = arith.constant 239 : i32
    %38 = tpu.dynamic_rotate %1 by %c239_i32 dim 1 : vector<4x256xf32>, i32 -> vector<4x256xf32>
    %c8 = arith.constant 8 : index
    %c0_19 = arith.constant 0 : index
    %c0_20 = arith.constant 0 : index
    %39 = vector.load %arg6[%c8, %c0_19, %c0_20] : memref<9x1x256xf32, #tpu.memory_space<vmem>>, vector<1x1x256xf32>
    %40 = vector.shape_cast %39 : vector<1x1x256xf32> to vector<1x256xf32>
    %41 = vector.broadcast %40 : vector<1x256xf32> to vector<4x256xf32>
    %42 = arith.mulf %38, %41 : vector<4x256xf32>
    %43 = tpu.concatenate %7, %12, %17, %22, %1, %27, %32, %37, %42 in 0 : vector<4x256xf32>, vector<4x256xf32>, vector<4x256xf32>, vector<4x256xf32>, vector<4x256xf32>, vector<4x256xf32>, vector<4x256xf32>, vector<4x256xf32>, vector<4x256xf32> -> vector<36x256xf32>
    %cst = arith.constant dense<0.000000e+00> : vector<4x256xf32>
    %44 = tpu.matmul %2, %43, %cst {dimension_numbers = #tpu.dot_dimension_numbers<[1], [0], [0], [1], [0, 0, 1, 1], [], []>} : vector<4x36xf32>, vector<36x256xf32>, vector<4x256xf32> -> vector<4x256xf32>
    %c0_21 = arith.constant 0 : index
    %c0_22 = arith.constant 0 : index
    %45 = vector.load %arg3[%c0_21, %c0_22] : memref<4x1xf32, #tpu.memory_space<vmem>>, vector<4x1xf32>
    %46 = vector.broadcast %45 : vector<4x1xf32> to vector<4x256xf32>
    %47 = arith.addf %44, %46 : vector<4x256xf32>
    %cst_23 = arith.constant 0.000000e+00 : f32
    %48 = vector.broadcast %cst_23 : f32 to vector<4x256xf32>
    %49 = arith.maximumf %47, %48 : vector<4x256xf32>
    %c0_24 = arith.constant 0 : index
    %c0_25 = arith.constant 0 : index
    %50 = vector.load %arg4[%c0_24, %c0_25] : memref<4x36xf32, #tpu.memory_space<vmem>>, vector<4x36xf32>
    %c17_i32_26 = arith.constant 17 : i32
    %51 = tpu.dynamic_rotate %49 by %c17_i32_26 dim 1 : vector<4x256xf32>, i32 -> vector<4x256xf32>
    %c0_27 = arith.constant 0 : index
    %c0_28 = arith.constant 0 : index
    %c0_29 = arith.constant 0 : index
    %52 = vector.load %arg6[%c0_27, %c0_28, %c0_29] : memref<9x1x256xf32, #tpu.memory_space<vmem>>, vector<1x1x256xf32>
    %53 = vector.shape_cast %52 : vector<1x1x256xf32> to vector<1x256xf32>
    %54 = vector.broadcast %53 : vector<1x256xf32> to vector<4x256xf32>
    %55 = arith.mulf %51, %54 : vector<4x256xf32>
    %c16_i32_30 = arith.constant 16 : i32
    %56 = tpu.dynamic_rotate %49 by %c16_i32_30 dim 1 : vector<4x256xf32>, i32 -> vector<4x256xf32>
    %c1_31 = arith.constant 1 : index
    %c0_32 = arith.constant 0 : index
    %c0_33 = arith.constant 0 : index
    %57 = vector.load %arg6[%c1_31, %c0_32, %c0_33] : memref<9x1x256xf32, #tpu.memory_space<vmem>>, vector<1x1x256xf32>
    %58 = vector.shape_cast %57 : vector<1x1x256xf32> to vector<1x256xf32>
    %59 = vector.broadcast %58 : vector<1x256xf32> to vector<4x256xf32>
    %60 = arith.mulf %56, %59 : vector<4x256xf32>
    %c15_i32_34 = arith.constant 15 : i32
    %61 = tpu.dynamic_rotate %49 by %c15_i32_34 dim 1 : vector<4x256xf32>, i32 -> vector<4x256xf32>
    %c2_35 = arith.constant 2 : index
    %c0_36 = arith.constant 0 : index
    %c0_37 = arith.constant 0 : index
    %62 = vector.load %arg6[%c2_35, %c0_36, %c0_37] : memref<9x1x256xf32, #tpu.memory_space<vmem>>, vector<1x1x256xf32>
    %63 = vector.shape_cast %62 : vector<1x1x256xf32> to vector<1x256xf32>
    %64 = vector.broadcast %63 : vector<1x256xf32> to vector<4x256xf32>
    %65 = arith.mulf %61, %64 : vector<4x256xf32>
    %c1_i32_38 = arith.constant 1 : i32
    %66 = tpu.dynamic_rotate %49 by %c1_i32_38 dim 1 : vector<4x256xf32>, i32 -> vector<4x256xf32>
    %c3_39 = arith.constant 3 : index
    %c0_40 = arith.constant 0 : index
    %c0_41 = arith.constant 0 : index
    %67 = vector.load %arg6[%c3_39, %c0_40, %c0_41] : memref<9x1x256xf32, #tpu.memory_space<vmem>>, vector<1x1x256xf32>
    %68 = vector.shape_cast %67 : vector<1x1x256xf32> to vector<1x256xf32>
    %69 = vector.broadcast %68 : vector<1x256xf32> to vector<4x256xf32>
    %70 = arith.mulf %66, %69 : vector<4x256xf32>
    %c255_i32_42 = arith.constant 255 : i32
    %71 = tpu.dynamic_rotate %49 by %c255_i32_42 dim 1 : vector<4x256xf32>, i32 -> vector<4x256xf32>
    %c5_43 = arith.constant 5 : index
    %c0_44 = arith.constant 0 : index
    %c0_45 = arith.constant 0 : index
    %72 = vector.load %arg6[%c5_43, %c0_44, %c0_45] : memref<9x1x256xf32, #tpu.memory_space<vmem>>, vector<1x1x256xf32>
    %73 = vector.shape_cast %72 : vector<1x1x256xf32> to vector<1x256xf32>
    %74 = vector.broadcast %73 : vector<1x256xf32> to vector<4x256xf32>
    %75 = arith.mulf %71, %74 : vector<4x256xf32>
    %c241_i32_46 = arith.constant 241 : i32
    %76 = tpu.dynamic_rotate %49 by %c241_i32_46 dim 1 : vector<4x256xf32>, i32 -> vector<4x256xf32>
    %c6_47 = arith.constant 6 : index
    %c0_48 = arith.constant 0 : index
    %c0_49 = arith.constant 0 : index
    %77 = vector.load %arg6[%c6_47, %c0_48, %c0_49] : memref<9x1x256xf32, #tpu.memory_space<vmem>>, vector<1x1x256xf32>
    %78 = vector.shape_cast %77 : vector<1x1x256xf32> to vector<1x256xf32>
    %79 = vector.broadcast %78 : vector<1x256xf32> to vector<4x256xf32>
    %80 = arith.mulf %76, %79 : vector<4x256xf32>
    %c240_i32_50 = arith.constant 240 : i32
    %81 = tpu.dynamic_rotate %49 by %c240_i32_50 dim 1 : vector<4x256xf32>, i32 -> vector<4x256xf32>
    %c7_51 = arith.constant 7 : index
    %c0_52 = arith.constant 0 : index
    %c0_53 = arith.constant 0 : index
    %82 = vector.load %arg6[%c7_51, %c0_52, %c0_53] : memref<9x1x256xf32, #tpu.memory_space<vmem>>, vector<1x1x256xf32>
    %83 = vector.shape_cast %82 : vector<1x1x256xf32> to vector<1x256xf32>
    %84 = vector.broadcast %83 : vector<1x256xf32> to vector<4x256xf32>
    %85 = arith.mulf %81, %84 : vector<4x256xf32>
    %c239_i32_54 = arith.constant 239 : i32
    %86 = tpu.dynamic_rotate %49 by %c239_i32_54 dim 1 : vector<4x256xf32>, i32 -> vector<4x256xf32>
    %c8_55 = arith.constant 8 : index
    %c0_56 = arith.constant 0 : index
    %c0_57 = arith.constant 0 : index
    %87 = vector.load %arg6[%c8_55, %c0_56, %c0_57] : memref<9x1x256xf32, #tpu.memory_space<vmem>>, vector<1x1x256xf32>
    %88 = vector.shape_cast %87 : vector<1x1x256xf32> to vector<1x256xf32>
    %89 = vector.broadcast %88 : vector<1x256xf32> to vector<4x256xf32>
    %90 = arith.mulf %86, %89 : vector<4x256xf32>
    %91 = tpu.concatenate %55, %60, %65, %70, %49, %75, %80, %85, %90 in 0 : vector<4x256xf32>, vector<4x256xf32>, vector<4x256xf32>, vector<4x256xf32>, vector<4x256xf32>, vector<4x256xf32>, vector<4x256xf32>, vector<4x256xf32>, vector<4x256xf32> -> vector<36x256xf32>
    %cst_58 = arith.constant dense<0.000000e+00> : vector<4x256xf32>
    %92 = tpu.matmul %50, %91, %cst_58 {dimension_numbers = #tpu.dot_dimension_numbers<[1], [0], [0], [1], [0, 0, 1, 1], [], []>} : vector<4x36xf32>, vector<36x256xf32>, vector<4x256xf32> -> vector<4x256xf32>
    %c0_59 = arith.constant 0 : index
    %c0_60 = arith.constant 0 : index
    %93 = vector.load %arg5[%c0_59, %c0_60] : memref<4x1xf32, #tpu.memory_space<vmem>>, vector<4x1xf32>
    %94 = vector.broadcast %93 : vector<4x1xf32> to vector<4x256xf32>
    %95 = arith.addf %92, %94 : vector<4x256xf32>
    %96 = arith.addf %1, %95 : vector<4x256xf32>
    %c0_61 = arith.constant 0 : index
    %c0_62 = arith.constant 0 : index
    %c0_63 = arith.constant 0 : index
    %97 = vector.load %arg7[%c0_61, %c0_62, %c0_63] : memref<1x4x256xf32, #tpu.memory_space<vmem>>, vector<1x4x256xf32>
    %98 = vector.shape_cast %97 : vector<1x4x256xf32> to vector<4x256xf32>
    %99 = vector.shape_cast %96 : vector<4x256xf32> to vector<1x4x256xf32>
    tpu.vector_store %arg7[%c0_61, %c0_62, %c0_63], %99 {strides = array<i32>} : memref<1x4x256xf32, #tpu.memory_space<vmem>>, vector<1x4x256xf32>,
    return
  }
  func.func @transform_0(%arg0: i32) -> (i32, i32, i32) {
    %c0_i32 = arith.constant 0 : i32
    %c0_i32_0 = arith.constant 0 : i32
    %c0_i32_1 = arith.constant 0 : i32
    return %arg0, %c0_i32, %c0_i32_0 : i32, i32, i32
  }
  func.func @transform_1(%arg0: i32) -> (i32, i32) {
    %c0_i32 = arith.constant 0 : i32
    %c0_i32_0 = arith.constant 0 : i32
    %c0_i32_1 = arith.constant 0 : i32
    return %c0_i32, %c0_i32_0 : i32, i32
  }
  func.func @transform_2(%arg0: i32) -> (i32, i32) {
    %c0_i32 = arith.constant 0 : i32
    %c0_i32_0 = arith.constant 0 : i32
    %c0_i32_1 = arith.constant 0 : i32
    return %c0_i32, %c0_i32_0 : i32, i32
  }
  func.func @transform_3(%arg0: i32) -> (i32, i32) {
    %c0_i32 = arith.constant 0 : i32
    %c0_i32_0 = arith.constant 0 : i32
    %c0_i32_1 = arith.constant 0 : i32
    return %c0_i32, %c0_i32_0 : i32, i32
  }
  func.func @transform_4(%arg0: i32) -> (i32, i32) {
    %c0_i32 = arith.constant 0 : i32
    %c0_i32_0 = arith.constant 0 : i32
    %c0_i32_1 = arith.constant 0 : i32
    return %c0_i32, %c0_i32_0 : i32, i32
  }
  func.func @transform_5(%arg0: i32) -> (i32, i32, i32) {
    %c0_i32 = arith.constant 0 : i32
    %c0_i32_0 = arith.constant 0 : i32
    %c0_i32_1 = arith.constant 0 : i32
    %c0_i32_2 = arith.constant 0 : i32
    return %c0_i32, %c0_i32_0, %c0_i32_1 : i32, i32, i32
  }
  func.func @transform_6(%arg0: i32) -> (i32, i32, i32) {
    %c0_i32 = arith.constant 0 : i32
    %c0_i32_0 = arith.constant 0 : i32
    %c0_i32_1 = arith.constant 0 : i32
    return %arg0, %c0_i32, %c0_i32_0 : i32, i32, i32
  }
}

</mosaic_0001>

<llo_original>
// kernel: tpu_custom_call.1
$region0: #{tpu_custom_call.1}
  #allocation0 [shape = 'u32[]', space=smem, size = 0x4, offset = 0x4, fixed_abs, tag = 'smem constant byte address 0x4 - core index']
  #allocation1 [shape = 'u32[144,128]{1,0:T(1,128)}', space=vmem, size = 0x12000, scoped, tag = 'internal scratch']
  %s0 = inlined_call_operand.hbm [shape: f32[2,4,256], index: 0, kind: input, shape index: {}]
  %s1 = inlined_call_operand.vmem [shape: f32[4,36], index: 1, kind: input, shape index: {}]
  %s2 = inlined_call_operand.vmem [shape: f32[4,1], index: 2, kind: input, shape index: {}]
  %s3 = inlined_call_operand.vmem [shape: f32[4,36], index: 3, kind: input, shape index: {}]
  %s4 = inlined_call_operand.vmem [shape: f32[4,1], index: 4, kind: input, shape index: {}]
  %s5 = inlined_call_operand.vmem [shape: f32[9,1,256], index: 5, kind: input, shape index: {}]
  %s6 = inlined_call_operand.hbm [shape: f32[2,4,256], index: 6, kind: output, shape index: {}]
  %s7 = sld [smem:[#allocation0]]
  $region61: #{tpu_custom_call.1} parent=0
    _
  %s9 = ssub.s32 1, %s7
  %s10 = scalar_select 0, %s9, %s7
  $region1: #{tpu_custom_call.1} parent=0
    #allocation2 [shape = 'u8[8192]{0}', space=vmem, size = 0x2000, scoped, tag = 'input window, operand 0']
    #allocation3 [shape = 's32[2]{0}', space=sflag, size = 0x8, scoped, tag = 'scoped memory for tpu_custom_call.1']
    #allocation4 [shape = 's32[2]{0}', space=sflag, size = 0x8, scoped, tag = 'scoped memory for tpu_custom_call.1']
    #allocation5 [shape = 'u8[8192]{0}', space=vmem, size = 0x2000, scoped, tag = 'output window, operand 0']
    %11 = vsyncpa [#allocation3], 0
    %s12 = scalar_lea.sflag [#allocation3], 1
    %13 = vsyncpa %s12, 0
    %14 = vsyncpa [#allocation4], 0
    %s15 = scalar_lea.sflag [#allocation4], 1
    %16 = vsyncpa %s15, 0
    loop: start=0, step=1, limit=4
    $region2: #{tpu_custom_call.1} parent=1 // loop_pre_header
      _
    $region3: #{tpu_custom_call.1} parent=1 // loop_header
      %s18 = sphi 0, %s22
      %p19 = scmp.ge.s32.totalorder %s18, 4
      %s28 = sphi 0, %s30
      %s31 = sphi 0, %s28
      %s32 = sphi 0, %s31
      %s48 = sphi 0, %s32
      %s52 = sphi 0, %s52
      %s54 = sphi 0, %s52
      %s55 = sphi 0, %s54
      %s69 = sphi 0, %s55
      %s73 = sphi 0, %s73
      %s75 = sphi 0, %s73
      %s76 = sphi 0, %s75
      %s90 = sphi 0, %s76
      %s94 = sphi 0, %s94
      %s96 = sphi 0, %s94
      %s97 = sphi 0, %s96
      %s111 = sphi 0, %s97
      %s115 = sphi 0, %s115
      %s117 = sphi 0, %s115
      %s118 = sphi 0, %s117
      %s132 = sphi 0, %s118
      %s136 = sphi 0, %s136
      %s138 = sphi 0, %s136
      %s139 = sphi 0, %s138
      %s153 = sphi 0, %s139
      %s159 = sphi 0, %s161
      %s162 = sphi 0, %s159
      %s163 = sphi 0, %s162
      %s179 = sphi 0, %s163
    $region4: #{tpu_custom_call.1} parent=1 // loop_header_branch
      %21 = sbr.rel (%p19) target = $region8
    $region5: #{tpu_custom_call.1} parent=1 // loop_body
      %s23 = ssub.s32 %s18, 1
      %s24 = ssub.s32 %s18, 2
      %s25 = sadd.s32 %s18, 1
      %s26 = ssub.s32 %s18, %s25
      %p27 = scmp.eq.s32.totalorder %s26, 0
      %s29 = sadd.s32 %s28, 1
      %s30 = scalar_select %p27, %s28, %s29
      %p33 = pneg %p27
      %p34 = scmp.eq.s32.totalorder %s18, 1
      %p35 = por %p33, %p34
      %p36 = scmp.ne.s32.totalorder %s28, %s31
      %p37 = scmp.eq.s32.totalorder %s18, 0
      %p38 = por %p36, %p37
      %p39 = scmp.ne.s32.totalorder %s28, %s31
      %p40 = scmp.eq.s32.totalorder %s23, 1
      %p41 = por %p39, %p40
      %p42 = scmp.ne.s32.totalorder %s31, %s32
      %p43 = scmp.eq.s32.totalorder %s23, 0
      %p44 = por %p42, %p43
      %p45 = scmp.ne.s32.totalorder %s31, %s32
      %p46 = scmp.eq.s32.totalorder %s24, 1
      %p47 = por %p45, %p46
      %p49 = scmp.ne.s32.totalorder %s32, %s48
      %p50 = scmp.eq.s32.totalorder %s24, 0
      %p51 = por %p49, %p50
      %s53 = sadd.s32 %s52, 1
      %p56 = scmp.eq.s32.totalorder %s18, 1
      %p57 = scmp.ne.s32.totalorder %s52, %s54
      %p58 = scmp.eq.s32.totalorder %s18, 0
      %p59 = por %p57, %p58
      %p60 = scmp.ne.s32.totalorder %s52, %s54
      %p61 = scmp.eq.s32.totalorder %s23, 1
      %p62 = por %p60, %p61
      %p63 = scmp.ne.s32.totalorder %s54, %s55
      %p64 = scmp.eq.s32.totalorder %s23, 0
      %p65 = por %p63, %p64
      %p66 = scmp.ne.s32.totalorder %s54, %s55
      %p67 = scmp.eq.s32.totalorder %s24, 1
      %p68 = por %p66, %p67
      %p70 = scmp.ne.s32.totalorder %s55, %s69
      %p71 = scmp.eq.s32.totalorder %s24, 0
      %p72 = por %p70, %p71
      %s74 = sadd.s32 %s73, 1
      %p77 = scmp.eq.s32.totalorder %s18, 1
      %p78 = scmp.ne.s32.totalorder %s73, %s75
      %p79 = scmp.eq.s32.totalorder %s18, 0
      %p80 = por %p78, %p79
      %p81 = scmp.ne.s32.totalorder %s73, %s75
      %p82 = scmp.eq.s32.totalorder %s23, 1
      %p83 = por %p81, %p82
      %p84 = scmp.ne.s32.totalorder %s75, %s76
      %p85 = scmp.eq.s32.totalorder %s23, 0
      %p86 = por %p84, %p85
      %p87 = scmp.ne.s32.totalorder %s75, %s76
      %p88 = scmp.eq.s32.totalorder %s24, 1
      %p89 = por %p87, %p88
      %p91 = scmp.ne.s32.totalorder %s76, %s90
      %p92 = scmp.eq.s32.totalorder %s24, 0
      %p93 = por %p91, %p92
      %s95 = sadd.s32 %s94, 1
      %p98 = scmp.eq.s32.totalorder %s18, 1
      %p99 = scmp.ne.s32.totalorder %s94, %s96
      %p100 = scmp.eq.s32.totalorder %s18, 0
      %p101 = por %p99, %p100
      %p102 = scmp.ne.s32.totalorder %s94, %s96
      %p103 = scmp.eq.s32.totalorder %s23, 1
      %p104 = por %p102, %p103
      %p105 = scmp.ne.s32.totalorder %s96, %s97
      %p106 = scmp.eq.s32.totalorder %s23, 0
      %p107 = por %p105, %p106
      %p108 = scmp.ne.s32.totalorder %s96, %s97
      %p109 = scmp.eq.s32.totalorder %s24, 1
      %p110 = por %p108, %p109
      %p112 = scmp.ne.s32.totalorder %s97, %s111
      %p113 = scmp.eq.s32.totalorder %s24, 0
      %p114 = por %p112, %p113
      %s116 = sadd.s32 %s115, 1
      %p119 = scmp.eq.s32.totalorder %s18, 1
      %p120 = scmp.ne.s32.totalorder %s115, %s117
      %p121 = scmp.eq.s32.totalorder %s18, 0
      %p122 = por %p120, %p121
      %p123 = scmp.ne.s32.totalorder %s115, %s117
      %p124 = scmp.eq.s32.totalorder %s23, 1
      %p125 = por %p123, %p124
      %p126 = scmp.ne.s32.totalorder %s117, %s118
      %p127 = scmp.eq.s32.totalorder %s23, 0
      %p128 = por %p126, %p127
      %p129 = scmp.ne.s32.totalorder %s117, %s118
      %p130 = scmp.eq.s32.totalorder %s24, 1
      %p131 = por %p129, %p130
      %p133 = scmp.ne.s32.totalorder %s118, %s132
      %p134 = scmp.eq.s32.totalorder %s24, 0
      %p135 = por %p133, %p134
      %s137 = sadd.s32 %s136, 1
      %p140 = scmp.eq.s32.totalorder %s18, 1
      %p141 = scmp.ne.s32.totalorder %s136, %s138
      %p142 = scmp.eq.s32.totalorder %s18, 0
      %p143 = por %p141, %p142
      %p144 = scmp.ne.s32.totalorder %s136, %s138
      %p145 = scmp.eq.s32.totalorder %s23, 1
      %p146 = por %p144, %p145
      %p147 = scmp.ne.s32.totalorder %s138, %s139
      %p148 = scmp.eq.s32.totalorder %s23, 0
      %p149 = por %p147, %p148
      %p150 = scmp.ne.s32.totalorder %s138, %s139
      %p151 = scmp.eq.s32.totalorder %s24, 1
      %p152 = por %p150, %p151
      %p154 = scmp.ne.s32.totalorder %s139, %s153
      %p155 = scmp.eq.s32.totalorder %s24, 0
      %p156 = por %p154, %p155
      %s157 = ssub.s32 %s18, %s25
      %p158 = scmp.eq.s32.totalorder %s157, 0
      %s160 = sadd.s32 %s159, 1
      %s161 = scalar_select %p158, %s159, %s160
      %p164 = pneg %p158
      %p165 = scmp.eq.s32.totalorder %s18, 1
      %p166 = por %p164, %p165
      %p167 = scmp.ne.s32.totalorder %s159, %s162
      %p168 = scmp.eq.s32.totalorder %s18, 0
      %p169 = por %p167, %p168
      %p170 = scmp.ne.s32.totalorder %s159, %s162
      %p171 = scmp.eq.s32.totalorder %s23, 1
      %p172 = por %p170, %p171
      %p173 = scmp.ne.s32.totalorder %s162, %s163
      %p174 = scmp.eq.s32.totalorder %s23, 0
      %p175 = por %p173, %p174
      %p176 = scmp.ne.s32.totalorder %s162, %s163
      %p177 = scmp.eq.s32.totalorder %s24, 1
      %p178 = por %p176, %p177
      %p180 = scmp.ne.s32.totalorder %s163, %s179
      %p181 = scmp.eq.s32.totalorder %s24, 0
      %p182 = por %p180, %p181
      %p183 = scmp.le.s32.totalorder 1, %s18
      %p184 = scmp.lt.s32.totalorder %s18, 3
      %p185 = pnand %p183, %p184
      %p186 = pneg %p185
      // Predicated region
      $region9: #{tpu_custom_call.1} parent=5 // pred_check
        _
      $region10: #{tpu_custom_call.1} parent=5 // pred_check_branch
        %188 = sbr.rel (%p185) target = $region12
      $region11: #{tpu_custom_call.1} parent=5 // pred_region
        %s189 = ssub.s32 %s18, 1
        // Predicated region
        $region13: #{tpu_custom_call.1} parent=11 // pred_check
          %p190 = pneg %p65
        $region14: #{tpu_custom_call.1} parent=11 // pred_check_branch
          %192 = sbr.rel (%p190) target = $region16
        $region15: #{tpu_custom_call.1} parent=11 // pred_region
          _
        $region16: #{tpu_custom_call.1} parent=11 // pred_fallthru
          _
        // Predicated region
        $region17: #{tpu_custom_call.1} parent=11 // pred_check
          %p193 = pneg %p86
        $region18: #{tpu_custom_call.1} parent=11 // pred_check_branch
          %195 = sbr.rel (%p193) target = $region20
        $region19: #{tpu_custom_call.1} parent=11 // pred_region
          _
        $region20: #{tpu_custom_call.1} parent=11 // pred_fallthru
          _
        // Predicated region
        $region21: #{tpu_custom_call.1} parent=11 // pred_check
          %p196 = pneg %p107
        $region22: #{tpu_custom_call.1} parent=11 // pred_check_branch
          %198 = sbr.rel (%p196) target = $region24
        $region23: #{tpu_custom_call.1} parent=11 // pred_region
          _
        $region24: #{tpu_custom_call.1} parent=11 // pred_fallthru
          _
        // Predicated region
        $region25: #{tpu_custom_call.1} parent=11 // pred_check
          %p199 = pneg %p128
        $region26: #{tpu_custom_call.1} parent=11 // pred_check_branch
          %201 = sbr.rel (%p199) target = $region28
        $region27: #{tpu_custom_call.1} parent=11 // pred_region
          _
        $region28: #{tpu_custom_call.1} parent=11 // pred_fallthru
          _
        // Predicated region
        $region29: #{tpu_custom_call.1} parent=11 // pred_check
          %p202 = pneg %p149
        $region30: #{tpu_custom_call.1} parent=11 // pred_check_branch
          %204 = sbr.rel (%p202) target = $region32
        $region31: #{tpu_custom_call.1} parent=11 // pred_region
          _
        $region32: #{tpu_custom_call.1} parent=11 // pred_fallthru
          _
      $region12: #{tpu_custom_call.1} parent=5 // pred_fallthru
        _
      %p205 = scmp.lt.s32.totalorder %s18, 2
      // Predicated region
      $region33: #{tpu_custom_call.1} parent=5 // pred_check
        %p206 = pneg %p205
      $region34: #{tpu_custom_call.1} parent=5 // pred_check_branch
        %208 = sbr.rel (%p206) target = $region36
      $region35: #{tpu_custom_call.1} parent=5 // pred_region
        // Predicated region
        $region37: #{tpu_custom_call.1} parent=35 // pred_check
          %p209 = pneg %p38
        $region38: #{tpu_custom_call.1} parent=35 // pred_check_branch
          %211 = sbr.rel (%p209) target = $region40
        $region39: #{tpu_custom_call.1} parent=35 // pred_region
          %s212 = sand.u32 %s28, 1
          %s213 = scalar_lea.sflag [#allocation3], %s212
          %s214 = sand.u32 %s28, 1
          %s215 = smul.addr %s214, 8
          %s216 = scalar_lea.vmem [#allocation2], %s215
          %s218 = ssub.s32 128, 128
          %219 = vsyncadd %s213, %s218
          %s220 = smul.addr %s18, 2
          %s221 = smul.addr %s220, 64
          %s222 = scalar_lea.hbm %s0, %s221
          %s224 = sshll.u32 %s216, 4
          %s225 = int_to_ptr.vmem [resolvable:$true] %s224
          %227 = dma.hbm_to_vmem [thread:$0]  %s222, 128, %s225, %s213
        $region40: #{tpu_custom_call.1} parent=35 // pred_fallthru
          _
      $region36: #{tpu_custom_call.1} parent=5 // pred_fallthru
        _
      %p228 = scmp.le.s32.totalorder 1, %s18
      %p229 = scmp.lt.s32.totalorder %s18, 3
      %p230 = pnand %p228, %p229
      %p231 = pneg %p230
      // Predicated region
      $region41: #{tpu_custom_call.1} parent=5 // pred_check
        _
      $region42: #{tpu_custom_call.1} parent=5 // pred_check_branch
        %233 = sbr.rel (%p230) target = $region44
      $region43: #{tpu_custom_call.1} parent=5 // pred_region
        %s234 = ssub.s32 %s18, 1
        %s235 = sand.u32 %s31, 1
        %s236 = scalar_lea.sflag [#allocation3], %s235
        %s237 = sand.u32 %s31, 1
        %s238 = smul.addr %s237, 8
        %s239 = scalar_lea.vmem [#allocation2], %s238
        // Predicated region
        $region45: #{tpu_custom_call.1} parent=43 // pred_check
          %p240 = pneg %p44
        $region46: #{tpu_custom_call.1} parent=43 // pred_check_branch
          %242 = sbr.rel (%p240) target = $region48
        $region47: #{tpu_custom_call.1} parent=43 // pred_region
          %243 = dma.done %s236, 128
        $region48: #{tpu_custom_call.1} parent=43 // pred_fallthru
          _
        %s244 = sand.u32 %s31, 1
        %s245 = scalar_lea.sflag [#allocation3], %s244
        %s246 = sand.u32 %s31, 1
        %s247 = smul.addr %s246, 8
        %s248 = scalar_lea.vmem [#allocation2], %s247
        %p249 = pneg %p44
        %p250 = pneg %p41
        %p251 = pneg %p65
        %p252 = pneg %p62
        %p253 = pneg %p86
        %p254 = pneg %p83
        %p255 = pneg %p107
        %p256 = pneg %p104
        %p257 = pneg %p128
        %p258 = pneg %p125
        %p259 = pneg %p149
        %p260 = pneg %p146
        %p261 = pneg %p175
        %p262 = pneg %p172
        %s263 = sand.u32 %s162, 1
        %s264 = scalar_lea.sflag [#allocation4], %s263
        %s265 = sand.u32 %s162, 1
        %s266 = smul.addr %s265, 8
        %s267 = scalar_lea.vmem [#allocation5], %s266
        %v268 = vld [vmem:[%s239] sm:$0xff]
        %v269 = vld [vmem:[%s1] sm:$0xf]
        %v271 = vcombine.high %v268, %v268
        %273 = vrot.lane.b32.xlu0 %v268, 17
        %v274 = vpop.permute.xlu0 %273
        %275 = vrot.lane.b32.xlu0 %v271, 17
        %v276 = vpop.permute.xlu0 %275
        %v277 = vlaneseq
        %v278 = vand.u32 %v277, 127
        %vm279 = vcmp.lt.s32.totalorder %v278, 17
        %v280 = vsel %vm279, %v274, %v276
        %v281 = vsel %vm279, %v276, %v274
        %v282 = vld [vmem:[%s5] sm:$0x3]
        %v284 = vlaneseq
        %v285 = vshrl.u32 %v284, 7
        %v286 = vsub.s32 0, %v285
        %v287 = vrot.slane %v282, %v286
        %v288 = vlaneseq
        %v289 = vshrl.u32 %v288, 7
        %v290 = vsub.s32 1, %v289
        %v291 = vrot.slane %v282, %v290
        %v294 = vmul.f32 %v281, %v287
        %v295 = vmul.f32 %v280, %v291
        %296 = vrot.lane.b32.xlu0 %v268, 16
        %v297 = vpop.permute.xlu0 %296
        %298 = vrot.lane.b32.xlu0 %v271, 16
        %v299 = vpop.permute.xlu0 %298
        %vm300 = vcmp.lt.s32.totalorder %v278, 16
        %v301 = vsel %vm300, %v297, %v299
        %v302 = vsel %vm300, %v299, %v297
        %s303 = scalar_lea.vmem %s5, 2
        %v304 = vld [vmem:[%s303] sm:$0x3]
        %v306 = vlaneseq
        %v307 = vshrl.u32 %v306, 7
        %v308 = vsub.s32 0, %v307
        %v309 = vrot.slane %v304, %v308
        %v310 = vlaneseq
        %v311 = vshrl.u32 %v310, 7
        %v312 = vsub.s32 1, %v311
        %v313 = vrot.slane %v304, %v312
        %v316 = vmul.f32 %v302, %v309
        %v317 = vmul.f32 %v301, %v313
        %318 = vrot.lane.b32.xlu0 %v268, 15
        %v319 = vpop.permute.xlu0 %318
        %320 = vrot.lane.b32.xlu0 %v271, 15
        %v321 = vpop.permute.xlu0 %320
        %vm322 = vcmp.lt.s32.totalorder %v278, 15
        %v323 = vsel %vm322, %v319, %v321
        %v324 = vsel %vm322, %v321, %v319
        %s325 = scalar_lea.vmem %s5, 4
        %v326 = vld [vmem:[%s325] sm:$0x3]
        %v328 = vlaneseq
        %v329 = vshrl.u32 %v328, 7
        %v330 = vsub.s32 0, %v329
        %v331 = vrot.slane %v326, %v330
        %v332 = vlaneseq
        %v333 = vshrl.u32 %v332, 7
        %v334 = vsub.s32 1, %v333
        %v335 = vrot.slane %v326, %v334
        %v338 = vmul.f32 %v324, %v331
        %v339 = vmul.f32 %v323, %v335
        %340 = vrot.lane.b32.xlu0 %v268, 1
        %v341 = vpop.permute.xlu0 %340
        %342 = vrot.lane.b32.xlu0 %v271, 1
        %v343 = vpop.permute.xlu0 %342
        %vm344 = vcmp.lt.s32.totalorder %v278, 1
        %v345 = vsel %vm344, %v341, %v343
        %v346 = vsel %vm344, %v343, %v341
        %s347 = scalar_lea.vmem %s5, 6
        %v348 = vld [vmem:[%s347] sm:$0x3]
        %v350 = vlaneseq
        %v351 = vshrl.u32 %v350, 7
        %v352 = vsub.s32 0, %v351
        %v353 = vrot.slane %v348, %v352
        %v354 = vlaneseq
        %v355 = vshrl.u32 %v354, 7
        %v356 = vsub.s32 1, %v355
        %v357 = vrot.slane %v348, %v356
        %v360 = vmul.f32 %v346, %v353
        %v361 = vmul.f32 %v345, %v357
        %362 = vrot.lane.b32.xlu0 %v268, 127
        %v363 = vpop.permute.xlu0 %362
        %364 = vrot.lane.b32.xlu0 %v271, 127
        %v365 = vpop.permute.xlu0 %364
        %vm366 = vcmp.lt.s32.totalorder %v278, 127
        %v367 = vsel %vm366, %v363, %v365
        %v368 = vsel %vm366, %v365, %v363
        %s369 = scalar_lea.vmem %s5, 10
        %v370 = vld [vmem:[%s369] sm:$0x3]
        %v372 = vlaneseq
        %v373 = vshrl.u32 %v372, 7
        %v374 = vsub.s32 0, %v373
        %v375 = vrot.slane %v370, %v374
        %v376 = vlaneseq
        %v377 = vshrl.u32 %v376, 7
        %v378 = vsub.s32 1, %v377
        %v379 = vrot.slane %v370, %v378
        %v382 = vmul.f32 %v367, %v375
        %v383 = vmul.f32 %v368, %v379
        %384 = vrot.lane.b32.xlu0 %v268, 113
        %v385 = vpop.permute.xlu0 %384
        %386 = vrot.lane.b32.xlu0 %v271, 113
        %v387 = vpop.permute.xlu0 %386
        %vm388 = vcmp.lt.s32.totalorder %v278, 113
        %v389 = vsel %vm388, %v385, %v387
        %v390 = vsel %vm388, %v387, %v385
        %s391 = scalar_lea.vmem %s5, 12
        %v392 = vld [vmem:[%s391] sm:$0x3]
        %v394 = vlaneseq
        %v395 = vshrl.u32 %v394, 7
        %v396 = vsub.s32 0, %v395
        %v397 = vrot.slane %v392, %v396
        %v398 = vlaneseq
        %v399 = vshrl.u32 %v398, 7
        %v400 = vsub.s32 1, %v399
        %v401 = vrot.slane %v392, %v400
        %v404 = vmul.f32 %v389, %v397
        %v405 = vmul.f32 %v390, %v401
        %406 = vrot.lane.b32.xlu0 %v268, 112
        %v407 = vpop.permute.xlu0 %406
        %408 = vrot.lane.b32.xlu0 %v271, 112
        %v409 = vpop.permute.xlu0 %408
        %vm410 = vcmp.lt.s32.totalorder %v278, 112
        %v411 = vsel %vm410, %v407, %v409
        %v412 = vsel %vm410, %v409, %v407
        %s413 = scalar_lea.vmem %s5, 14
        %v414 = vld [vmem:[%s413] sm:$0x3]
        %v416 = vlaneseq
        %v417 = vshrl.u32 %v416, 7
        %v418 = vsub.s32 0, %v417
        %v419 = vrot.slane %v414, %v418
        %v420 = vlaneseq
        %v421 = vshrl.u32 %v420, 7
        %v422 = vsub.s32 1, %v421
        %v423 = vrot.slane %v414, %v422
        %v426 = vmul.f32 %v411, %v419
        %v427 = vmul.f32 %v412, %v423
        %428 = vrot.lane.b32.xlu0 %v268, 111
        %v429 = vpop.permute.xlu0 %428
        %430 = vrot.lane.b32.xlu0 %v271, 111
        %v431 = vpop.permute.xlu0 %430
        %vm432 = vcmp.lt.s32.totalorder %v278, 111
        %v433 = vsel %vm432, %v429, %v431
        %v434 = vsel %vm432, %v431, %v429
        %s435 = scalar_lea.vmem %s5, 16
        %v436 = vld [vmem:[%s435] sm:$0x3]
        %v438 = vlaneseq
        %v439 = vshrl.u32 %v438, 7
        %v440 = vsub.s32 0, %v439
        %v441 = vrot.slane %v436, %v440
        %v442 = vlaneseq
        %v443 = vshrl.u32 %v442, 7
        %v444 = vsub.s32 1, %v443
        %v445 = vrot.slane %v436, %v444
        %v448 = vmul.f32 %v433, %v441
        %v449 = vmul.f32 %v434, %v445
        %v452 = vrot.slane %v316, 4
        %v453 = vrot.slane %v317, 4
        %v458 = vrot.slane %v360, 4
        %v459 = vrot.slane %v361, 4
        %v464 = vrot.slane %v382, 4
        %v465 = vrot.slane %v383, 4
        %v470 = vrot.slane %v426, 4
        %v471 = vrot.slane %v427, 4
        %vm474 = vcmask 1043456
        %v475 = vsel %vm474, %v294, %v452
        %v476 = vsel %vm474, %v295, %v453
        %v477 = vsel %vm474, %v338, %v458
        %v478 = vsel %vm474, %v339, %v459
        %v479 = vsel %vm474, %v268, %v464
        %v480 = vsel %vm474, %v271, %v465
        %v481 = vsel %vm474, %v404, %v470
        %v482 = vsel %vm474, %v405, %v471
        %v483 = vld [vmem:[%s2] sm:$0xf]
        %485 = vset.pattern.permute.xlu0 0
        %486 = vperm.xlu0 %485, %v483
        %v487 = vpop.permute.xlu0 %486
        %vm489 = vcmask 293888
        %v491 = vsel %vm489, %v269, 0
        %v494 = vsel %vm474, %v448, 0
        %v497 = vsel %vm474, %v449, 0
        %499 = vmatprep.subr.mxu0 %v476
        %500 = vmatpush1.msra.mxu0 %v475
        %501 = vmatprep.subr.mxu0 %v478
        %502 = vmatpush1.msra.mxu0 %v477
        %503 = vmatprep.subr.mxu0 %v480
        %504 = vmatpush1.msra.mxu0 %v479
        %505 = vmatprep.subr.mxu0 %v482
        %506 = vmatpush1.msra.mxu0 %v481
        %507 = vmatprep.subr.mxu0 %v497
        %508 = vmatpush1.msra.mxu0 %v494
        %509 = vmatprep.subr.mxu0 0.0
        %510 = vmatpush1.msra.mxu0 0.0
        %511 = vmatprep.subr.mxu0 0.0
        %512 = vmatpush1.msra.mxu0 0.0
        %513 = vmatprep.subr.mxu0 0.0
        %514 = vmatpush1.msra.mxu0 0.0
        %515 = vmatprep.subr.mxu0 0.0
        %516 = vmatpush1.msra.mxu0 0.0
        %517 = vmatprep.subr.mxu0 0.0
        %518 = vmatpush1.msra.mxu0 0.0
        %519 = vmatprep.subr.mxu0 0.0
        %520 = vmatpush1.msra.mxu0 0.0
        %521 = vmatprep.subr.mxu0 0.0
        %522 = vmatpush1.msra.mxu0 0.0
        %523 = vmatprep.subr.mxu0 0.0
        %524 = vmatpush1.msra.mxu0 0.0
        %525 = vmatprep.subr.mxu0 0.0
        %526 = vmatpush1.msra.mxu0 0.0
        %527 = vmatprep.subr.mxu0 0.0
        %528 = vmatpush1.msra.mxu0 0.0
        %529 = vmatprep.subr.mxu0 0.0
        %530 = vmatpush1.msra.mxu0 0.0
        %531 = vmatprep.subr.mxu0 0.0
        %532 = vmatpush1.msra.mxu0 0.0
        %533 = vmatprep.subr.mxu0 0.0
        %534 = vmatpush1.msra.mxu0 0.0
        %535 = vmatprep.subr.mxu0 0.0
        %536 = vmatpush1.msra.mxu0 0.0
        %537 = vmatprep.subr.mxu0 0.0
        %538 = vmatpush1.msra.mxu0 0.0
        %539 = vmatprep.subr.mxu0 0.0
        %540 = vmatpush1.msra.mxu0 0.0
        %541 = vmatprep.subr.mxu0 0.0
        %542 = vmatpush1.msra.mxu0 0.0
        %543 = vmatprep.subr.mxu0 0.0
        %544 = vmatpush1.msra.mxu0 0.0
        %545 = vmatprep.subr.mxu0 0.0
        %546 = vmatpush1.msra.mxu0 0.0
        %547 = vmatprep.subr.mxu0 0.0
        %548 = vmatpush1.msra.mxu0 0.0
        %549 = vmatprep.subr.mxu0 0.0
        %550 = vmatpush1.msra.mxu0 0.0
        %551 = vmatprep.subr.mxu0 0.0
        %552 = vmatpush1.msra.mxu0 0.0
        %553 = vmatprep.subr.mxu0 0.0
        %554 = vmatpush1.msra.mxu0 0.0
        %555 = vmatprep.subr.mxu0 0.0
        %556 = vmatpush1.msra.mxu0 0.0
        %557 = vmatprep.subr.mxu0 0.0
        %558 = vmatpush1.msra.mxu0 0.0
        %559 = vmatprep.subr.mxu0 0.0
        %560 = vmatpush1.msra.mxu0 0.0
        %561 = vmatprep.subr.mxu0 0.0
        %562 = vmatpush1.msra.mxu0 0.0
        %563 = vmatprep.mubr.f32.mxu0 0.0
        %564 = vmatmul.mubr.f32.gmra.mrb[0].mxu0 %v491
        %v565 = vpop.f32.mrb[0].mxu0
        %v566 = vadd.f32 %v487, %v565
        %v567 = vpop.f32.mrb[0].mxu0
        %v568 = vadd.f32 %v487, %v567
        %569 = vdwg.mxu0
        %v570 = vmax.f32 %v566, 0.0
        %v571 = vmax.f32 %v568, 0.0
        %v572 = vld [vmem:[%s3] sm:$0xf]
        %573 = vrot.lane.b32.xlu0 %v570, 17
        %v574 = vpop.permute.xlu0 %573
        %575 = vrot.lane.b32.xlu0 %v571, 17
        %v576 = vpop.permute.xlu0 %575
        %v577 = vsel %vm279, %v574, %v576
        %v578 = vsel %vm279, %v576, %v574
        %v579 = vmul.f32 %v578, %v287
        %v580 = vmul.f32 %v577, %v291
        %581 = vrot.lane.b32.xlu0 %v570, 16
        %v582 = vpop.permute.xlu0 %581
        %583 = vrot.lane.b32.xlu0 %v571, 16
        %v584 = vpop.permute.xlu0 %583
        %v585 = vsel %vm300, %v582, %v584
        %v586 = vsel %vm300, %v584, %v582
        %v587 = vmul.f32 %v586, %v309
        %v588 = vmul.f32 %v585, %v313
        %589 = vrot.lane.b32.xlu0 %v570, 15
        %v590 = vpop.permute.xlu0 %589
        %591 = vrot.lane.b32.xlu0 %v571, 15
        %v592 = vpop.permute.xlu0 %591
        %v593 = vsel %vm322, %v590, %v592
        %v594 = vsel %vm322, %v592, %v590
        %v595 = vmul.f32 %v594, %v331
        %v596 = vmul.f32 %v593, %v335
        %597 = vrot.lane.b32.xlu0 %v570, 1
        %v598 = vpop.permute.xlu0 %597
        %599 = vrot.lane.b32.xlu0 %v571, 1
        %v600 = vpop.permute.xlu0 %599
        %v601 = vsel %vm344, %v598, %v600
        %v602 = vsel %vm344, %v600, %v598
        %v603 = vmul.f32 %v602, %v353
        %v604 = vmul.f32 %v601, %v357
        %605 = vrot.lane.b32.xlu0 %v570, 127
        %v606 = vpop.permute.xlu0 %605
        %607 = vrot.lane.b32.xlu0 %v571, 127
        %v608 = vpop.permute.xlu0 %607
        %v609 = vsel %vm366, %v606, %v608
        %v610 = vsel %vm366, %v608, %v606
        %v611 = vmul.f32 %v609, %v375
        %v612 = vmul.f32 %v610, %v379
        %613 = vrot.lane.b32.xlu0 %v570, 113
        %v614 = vpop.permute.xlu0 %613
        %615 = vrot.lane.b32.xlu0 %v571, 113
        %v616 = vpop.permute.xlu0 %615
        %v617 = vsel %vm388, %v614, %v616
        %v618 = vsel %vm388, %v616, %v614
        %v619 = vmul.f32 %v617, %v397
        %v620 = vmul.f32 %v618, %v401
        %621 = vrot.lane.b32.xlu0 %v570, 112
        %v622 = vpop.permute.xlu0 %621
        %623 = vrot.lane.b32.xlu0 %v571, 112
        %v624 = vpop.permute.xlu0 %623
        %v625 = vsel %vm410, %v622, %v624
        %v626 = vsel %vm410, %v624, %v622
        %v627 = vmul.f32 %v625, %v419
        %v628 = vmul.f32 %v626, %v423
        %629 = vrot.lane.b32.xlu0 %v570, 111
        %v630 = vpop.permute.xlu0 %629
        %631 = vrot.lane.b32.xlu0 %v571, 111
        %v632 = vpop.permute.xlu0 %631
        %v633 = vsel %vm432, %v630, %v632
        %v634 = vsel %vm432, %v632, %v630
        %v635 = vmul.f32 %v633, %v441
        %v636 = vmul.f32 %v634, %v445
        %v639 = vrot.slane %v587, 4
        %v640 = vrot.slane %v588, 4
        %v645 = vrot.slane %v603, 4
        %v646 = vrot.slane %v604, 4
        %v651 = vrot.slane %v611, 4
        %v652 = vrot.slane %v612, 4
        %v657 = vrot.slane %v627, 4
        %v658 = vrot.slane %v628, 4
        %v661 = vsel %vm474, %v579, %v639
        %v662 = vsel %vm474, %v580, %v640
        %v663 = vsel %vm474, %v595, %v645
        %v664 = vsel %vm474, %v596, %v646
        %v665 = vsel %vm474, %v570, %v651
        %v666 = vsel %vm474, %v571, %v652
        %v667 = vsel %vm474, %v619, %v657
        %v668 = vsel %vm474, %v620, %v658
        %v669 = vld [vmem:[%s4] sm:$0xf]
        %671 = vset.pattern.permute.xlu0 0
        %672 = vperm.xlu0 %671, %v669
        %v673 = vpop.permute.xlu0 %672
        %v676 = vsel %vm489, %v572, 0
        %v679 = vsel %vm474, %v635, 0
        %v682 = vsel %vm474, %v636, 0
        %684 = vmatprep.subr.mxu0 %v662
        %685 = vmatpush1.msra.mxu0 %v661
        %686 = vmatprep.subr.mxu0 %v664
        %687 = vmatpush1.msra.mxu0 %v663
        %688 = vmatprep.subr.mxu0 %v666
        %689 = vmatpush1.msra.mxu0 %v665
        %690 = vmatprep.subr.mxu0 %v668
        %691 = vmatpush1.msra.mxu0 %v667
        %692 = vmatprep.subr.mxu0 %v682
        %693 = vmatpush1.msra.mxu0 %v679
        %694 = vmatprep.subr.mxu0 0.0
        %695 = vmatpush1.msra.mxu0 0.0
        %696 = vmatprep.subr.mxu0 0.0
        %697 = vmatpush1.msra.mxu0 0.0
        %698 = vmatprep.subr.mxu0 0.0
        %699 = vmatpush1.msra.mxu0 0.0
        %700 = vmatprep.subr.mxu0 0.0
        %701 = vmatpush1.msra.mxu0 0.0
        %702 = vmatprep.subr.mxu0 0.0
        %703 = vmatpush1.msra.mxu0 0.0
        %704 = vmatprep.subr.mxu0 0.0
        %705 = vmatpush1.msra.mxu0 0.0
        %706 = vmatprep.subr.mxu0 0.0
        %707 = vmatpush1.msra.mxu0 0.0
        %708 = vmatprep.subr.mxu0 0.0
        %709 = vmatpush1.msra.mxu0 0.0
        %710 = vmatprep.subr.mxu0 0.0
        %711 = vmatpush1.msra.mxu0 0.0
        %712 = vmatprep.subr.mxu0 0.0
        %713 = vmatpush1.msra.mxu0 0.0
        %714 = vmatprep.subr.mxu0 0.0
        %715 = vmatpush1.msra.mxu0 0.0
        %716 = vmatprep.subr.mxu0 0.0
        %717 = vmatpush1.msra.mxu0 0.0
        %718 = vmatprep.subr.mxu0 0.0
        %719 = vmatpush1.msra.mxu0 0.0
        %720 = vmatprep.subr.mxu0 0.0
        %721 = vmatpush1.msra.mxu0 0.0
        %722 = vmatprep.subr.mxu0 0.0
        %723 = vmatpush1.msra.mxu0 0.0
        %724 = vmatprep.subr.mxu0 0.0
        %725 = vmatpush1.msra.mxu0 0.0
        %726 = vmatprep.subr.mxu0 0.0
        %727 = vmatpush1.msra.mxu0 0.0
        %728 = vmatprep.subr.mxu0 0.0
        %729 = vmatpush1.msra.mxu0 0.0
        %730 = vmatprep.subr.mxu0 0.0
        %731 = vmatpush1.msra.mxu0 0.0
        %732 = vmatprep.subr.mxu0 0.0
        %733 = vmatpush1.msra.mxu0 0.0
        %734 = vmatprep.subr.mxu0 0.0
        %735 = vmatpush1.msra.mxu0 0.0
        %736 = vmatprep.subr.mxu0 0.0
        %737 = vmatpush1.msra.mxu0 0.0
        %738 = vmatprep.subr.mxu0 0.0
        %739 = vmatpush1.msra.mxu0 0.0
        %740 = vmatprep.subr.mxu0 0.0
        %741 = vmatpush1.msra.mxu0 0.0
        %742 = vmatprep.subr.mxu0 0.0
        %743 = vmatpush1.msra.mxu0 0.0
        %744 = vmatprep.subr.mxu0 0.0
        %745 = vmatpush1.msra.mxu0 0.0
        %746 = vmatprep.subr.mxu0 0.0
        %747 = vmatpush1.msra.mxu0 0.0
        %748 = vmatprep.mubr.f32.mxu0 0.0
        %749 = vmatmul.mubr.f32.gmra.mrb[0].mxu0 %v676
        %v750 = vpop.f32.mrb[0].mxu0
        %v751 = vadd.f32 %v673, %v750
        %v752 = vpop.f32.mrb[0].mxu0
        %v753 = vadd.f32 %v673, %v752
        %754 = vdwg.mxu0
        %v757 = vcombine.low %v751, %v753
        %v759 = vadd.f32 %v268, %v757
        %760 = vst [vmem:[%s267] sm:$0xff] %v759
        %s761 = sand.u32 %s162, 1
        %s762 = scalar_lea.sflag [#allocation4], %s761
        %s763 = sand.u32 %s162, 1
        %s764 = smul.addr %s763, 8
        %s765 = scalar_lea.vmem [#allocation5], %s764
        // Predicated region
        $region49: #{tpu_custom_call.1} parent=43 // pred_check
          %p766 = pneg %p172
        $region50: #{tpu_custom_call.1} parent=43 // pred_check_branch
          %768 = sbr.rel (%p766) target = $region52
        $region51: #{tpu_custom_call.1} parent=43 // pred_region
          %s770 = ssub.s32 128, 128
          %771 = vsyncadd %s762, %s770
          %s772 = smul.addr %s23, 2
          %s773 = smul.addr %s772, 64
          %s774 = scalar_lea.hbm %s6, %s773
          %s776 = sshll.u32 %s765, 4
          %s777 = int_to_ptr.vmem [resolvable:$true] %s776
          %779 = dma.vmem_to_hbm [thread:$0]  %s777, 128, %s774, %s762
        $region52: #{tpu_custom_call.1} parent=43 // pred_fallthru
          _
      $region44: #{tpu_custom_call.1} parent=5 // pred_fallthru
        _
      %p780 = scmp.le.s32.totalorder 2, %s18
      // Predicated region
      $region53: #{tpu_custom_call.1} parent=5 // pred_check
        %p781 = pneg %p780
      $region54: #{tpu_custom_call.1} parent=5 // pred_check_branch
        %783 = sbr.rel (%p781) target = $region56
      $region55: #{tpu_custom_call.1} parent=5 // pred_region
        %s784 = ssub.s32 %s18, 2
        // Predicated region
        $region57: #{tpu_custom_call.1} parent=55 // pred_check
          %p785 = pneg %p178
        $region58: #{tpu_custom_call.1} parent=55 // pred_check_branch
          %787 = sbr.rel (%p785) target = $region60
        $region59: #{tpu_custom_call.1} parent=55 // pred_region
          %s788 = sand.u32 %s163, 1
          %s789 = scalar_lea.sflag [#allocation4], %s788
          %s790 = sand.u32 %s163, 1
          %s791 = smul.addr %s790, 8
          %s792 = scalar_lea.vmem [#allocation5], %s791
          %793 = dma.done %s789, 128
        $region60: #{tpu_custom_call.1} parent=55 // pred_fallthru
          _
      $region56: #{tpu_custom_call.1} parent=5 // pred_fallthru
        _
    $region6: #{tpu_custom_call.1} parent=1 // loop_footer
      %s22 = sadd.s32 1, %s18
    $region7: #{tpu_custom_call.1} parent=1 // loop_footer_branch
      %17 = sbr.rel target = $region3
    $region8: #{tpu_custom_call.1} parent=1 // loop_exit
      _
    %794 = vsyncpa [#allocation3], 1
    %s795 = scalar_lea.sflag [#allocation3], 1
    %796 = vsyncpa %s795, 1
    %797 = vsyncpa [#allocation4], 1
    %s798 = scalar_lea.sflag [#allocation4], 1
    %799 = vsyncpa %s798, 1

</llo_original>
